<compile_context>
chip_gen: v5e
topology: v5e:2x2
jax: 0.10.0
libtpu: 0.0.40
codegen_flags: <defaults>
</compile_context>

<pallas_src>
import jax
import jax.numpy as jnp
from jax.experimental import pallas as pl
from jax.experimental.pallas import tpu as pltpu


# ---------------------------------- kernel ----------------------------------

def _nested_net_kernel(x_ref, w_ref, b_ref, o_ref):
    # x_ref: (20, tb)  transposed input tile   (batch on lanes, streamed over grid)
    # w_ref: (10, 20)  folded affine weight    (VMEM-resident, same block each step)
    # b_ref: (10, 1)   folded affine bias      (VMEM-resident)
    # o_ref: (10, tb)  transposed output tile  (lane-dense, unmasked stores)
    y = jnp.dot(w_ref[...], x_ref[...], preferred_element_type=jnp.float32)
    y = y + b_ref[...]            # broadcast bias along lanes
    o_ref[...] = y * y            # final `** 2`


# --------------- pure-JAX reference (matches the PyTorch module) ---------------

def _reference_pre_square(x, p):
    """Everything up to (but not including) the final square.  x: (B, 4, 5)."""
    B = x.shape[0]
    # Outer Conv1d(4, 4, k=3, padding=1) -- cross-correlation, like PyTorch.
    xp = jnp.pad(x, ((0, 0), (0, 0), (1, 1)))
    windows = jnp.stack([xp[:, :, k:k + 5] for k in range(3)], axis=-1)   # (B,4,5,3)
    c1 = jnp.einsum("bipk,oik->bop", windows, p["conv1_w"]) + p["conv1_b"][None, :, None]
    f1 = c1.reshape(B, 20)                                   # torch.flatten(., 1)
    f2 = f1 @ p["fc1_w"].T + p["fc1_b"]                      # Linear(20, 10)
    # Inner module (NestedNetInnerModule).
    r = f2.reshape(-1, 2, 5)
    c2 = jnp.einsum("bip,oi->bop", r, p["conv2_w"][:, :, 0]) + p["conv2_b"][None, :, None]
    f3 = c2.reshape(B, 10)                                   # torch.flatten(., 1)
    f4 = f3 @ p["fc2_w"].T + p["fc2_b"]                      # Linear(10, 10)
    return 3.0 * f4 + 1.0


def _reference_forward(x, p):
    return _reference_pre_square(x, p) ** 2


# ---------------- wrapper: fold all linear stages once, then matmul ----------------

def fold_affine(params):
    """Collapse conv1/fc1/conv2/fc2/(3*.+1) into pre_square = W_eff @ x_flat_col + b_eff.

    Returns (w_t, b_t) with shapes (10, 20) and (10, 1) for the transposed kernel.
    Call ONCE and reuse; do not re-fold per forward call.
    """
    zero = jnp.zeros((1, 4, 5), jnp.float32)
    eye = jnp.eye(20, dtype=jnp.float32).reshape(20, 4, 5)
    b_eff = _reference_pre_square(zero, params)              # (1, 10)
    w_eff = _reference_pre_square(eye, params) - b_eff       # (20, 10)
    return w_eff.T, b_eff.T                                  # (10, 20), (10, 1)


def _round_down_128(n):
    return (n // 128) * 128


def nested_net_forward_xla(x, w_t, b_t):
    """Plain-XLA path; preferable for tiny batches where launch/DMA setup dominates."""
    B = x.shape[0]
    x_flat = x.reshape(B, 20).astype(jnp.float32)
    y = x_flat @ w_t.T + b_t.T
    return y * y


def nested_net_forward(x, w_t, b_t, *, batch_tile=2048):
    """x: (B, 4, 5) float32 -> (B, 10) float32, matching NestedNet.forward (Pallas path)."""
    assert batch_tile % 128 == 0, "batch_tile must be lane (128) aligned"
    B = x.shape[0]
    # Lane-dense layout: batch on the 128-lane (last) axis.
    x_t = x.reshape(B, 20).astype(jnp.float32).T             # (20, B)

    if B < 256:
        # Single block equal to the full array dims (legal for any B, grid = 1).
        tb = B
    else:
        # Multiple of 128 lanes; guarantee >= 2 blocks so both v7x TCs are busy.
        tb = min(batch_tile, max(128, _round_down_128(B // 2)))

    grid = (pl.cdiv(B, tb),)                                  # ragged last block is masked

    out_t = pl.pallas_call(
        _nested_net_kernel,
        out_shape=jax.ShapeDtypeStruct((10, B), jnp.float32),
        grid_spec=pltpu.PrefetchScalarGridSpec(
            num_scalar_prefetch=0,
            grid=grid,
            in_specs=[
                pl.BlockSpec((20, tb), lambda i: (0, i)),     # streamed input tile
                pl.BlockSpec((10, 20), lambda i: (0, 0)),     # weight: loaded once, resident
                pl.BlockSpec((10, 1), lambda i: (0, 0)),      # bias:   loaded once, resident
            ],
            out_specs=pl.BlockSpec((10, tb), lambda i: (0, i)),
        ),
        compiler_params=pltpu.CompilerParams(
            dimension_semantics=("parallel",)),               # megacore-shardable batch axis
    )(x_t, w_t, b_t)
    return out_t.T                                            # (B, 10)


# ------------------------------------ demo ------------------------------------

if __name__ == "__main__":
    key = jax.random.PRNGKey(0)
    (k_x, k_c1w, k_c1b, k_f1w, k_f1b,
     k_c2w, k_c2b, k_f2w, k_f2b, k_big) = jax.random.split(key, 10)

    # Deterministic, PyTorch-like uniform init for all submodule parameters.
    params = {
        # Outer Conv1d(4, 4, k=3, padding=1): weight (out_c, in_c, k)
        "conv1_w": jax.random.uniform(k_c1w, (4, 4, 3), jnp.float32, -0.289, 0.289),
        "conv1_b": jax.random.uniform(k_c1b, (4,), jnp.float32, -0.289, 0.289),
        # Outer Linear(20, 10): weight (out, in)
        "fc1_w": jax.random.uniform(k_f1w, (10, 20), jnp.float32, -0.224, 0.224),
        "fc1_b": jax.random.uniform(k_f1b, (10,), jnp.float32, -0.224, 0.224),
        # Inner Conv1d(2, 2, k=1)
        "conv2_w": jax.random.uniform(k_c2w, (2, 2, 1), jnp.float32, -0.5, 0.5),
        "conv2_b": jax.random.uniform(k_c2b, (2,), jnp.float32, -0.5, 0.5),
        # Inner Linear(10, 10)
        "fc2_w": jax.random.uniform(k_f2w, (10, 10), jnp.float32, -0.316, 0.316),
        "fc2_b": jax.random.uniform(k_f2b, (10,), jnp.float32, -0.316, 0.316),
    }

    # Fold the affine chain ONCE (not per forward call).
    w_t, b_t = fold_affine(params)

    # Small demo batch matching NestedNet's input_size = (4, 5): single full-array block.
    B = 2
    x = jax.random.normal(k_x, (B, 4, 5), dtype=jnp.float32)
    out = jax.block_until_ready(nested_net_forward(x, w_t, b_t))
    ref = _reference_forward(x, params)
    assert out.shape == (B, 10)
    assert jnp.allclose(out, ref, atol=1e-4, rtol=1e-4), "mismatch vs reference (B=2)"

    # Lane-dense multi-block path with a ragged last tile (grid >= 2, no jnp.pad).
    Bb = 1000
    xb = jax.random.normal(k_big, (Bb, 4, 5), dtype=jnp.float32)
    outb = jax.block_until_ready(nested_net_forward(xb, w_t, b_t))
    refb = _reference_forward(xb, params)
    assert outb.shape == (Bb, 10)
    assert jnp.allclose(outb, refb, atol=1e-4, rtol=1e-4), "mismatch vs reference (tiled)"

    # Tiny-batch XLA fallback path stays consistent too.
    assert jnp.allclose(nested_net_forward_xla(x, w_t, b_t), ref, atol=1e-4, rtol=1e-4)

    print("KERNEL_OK")
</pallas_src>

<mosaic_0001>
module attributes {stable_mosaic.version = 11 : i64} {
  func.func @_nested_net_kernel(%arg0: i32, %arg1: memref<20x2xf32, #tpu.memory_space<vmem>>, %arg2: memref<10x20xf32, #tpu.memory_space<vmem>>, %arg3: memref<10x1xf32, #tpu.memory_space<vmem>>, %arg4: memref<10x2xf32, #tpu.memory_space<vmem>>) attributes {dimension_semantics = [#tpu.dimension_semantics<parallel>], iteration_bounds = array<i64: 1>, scalar_prefetch = 0 : i64, scratch_operands = 0 : i64, tpu.core_type = #tpu.core_type<tc>, window_params = [{transform_indices = @transform_0, window_bounds = array<i64: 20, 2>}, {pipeline_mode = #tpu.pipeline_mode<synchronous>, transform_indices = @transform_1, window_bounds = array<i64: 10, 20>}, {pipeline_mode = #tpu.pipeline_mode<synchronous>, transform_indices = @transform_2, window_bounds = array<i64: 10, 1>}, {transform_indices = @transform_3, window_bounds = array<i64: 10, 2>}]} {
    %c0 = arith.constant 0 : index
    %c0_0 = arith.constant 0 : index
    %0 = vector.load %arg2[%c0, %c0_0] : memref<10x20xf32, #tpu.memory_space<vmem>>, vector<10x20xf32>
    %c0_1 = arith.constant 0 : index
    %c0_2 = arith.constant 0 : index
    %1 = vector.load %arg1[%c0_1, %c0_2] : memref<20x2xf32, #tpu.memory_space<vmem>>, vector<20x2xf32>
    %cst = arith.constant dense<0.000000e+00> : vector<10x2xf32>
    %2 = tpu.matmul %0, %1, %cst {dimension_numbers = #tpu.dot_dimension_numbers<[1], [0], [0], [1], [0, 0, 1, 1], [], []>} : vector<10x20xf32>, vector<20x2xf32>, vector<10x2xf32> -> vector<10x2xf32>
    %c0_3 = arith.constant 0 : index
    %c0_4 = arith.constant 0 : index
    %3 = vector.load %arg3[%c0_3, %c0_4] : memref<10x1xf32, #tpu.memory_space<vmem>>, vector<10x1xf32>
    %4 = vector.broadcast %3 : vector<10x1xf32> to vector<10x2xf32>
    %5 = arith.addf %2, %4 : vector<10x2xf32>
    %6 = arith.mulf %5, %5 : vector<10x2xf32>
    %c0_5 = arith.constant 0 : index
    %c0_6 = arith.constant 0 : index
    %7 = vector.load %arg4[%c0_5, %c0_6] : memref<10x2xf32, #tpu.memory_space<vmem>>, vector<10x2xf32>
    tpu.vector_store %arg4[%c0_5, %c0_6], %6 {strides = array<i32>} : memref<10x2xf32, #tpu.memory_space<vmem>>, vector<10x2xf32>,
    return
  }
  func.func @transform_0(%arg0: i32) -> (i32, i32) {
    %c0_i32 = arith.constant 0 : i32
    %c0_i32_0 = arith.constant 0 : i32
    return %c0_i32, %arg0 : i32, i32
  }
  func.func @transform_1(%arg0: i32) -> (i32, i32) {
    %c0_i32 = arith.constant 0 : i32
    %c0_i32_0 = arith.constant 0 : i32
    %c0_i32_1 = arith.constant 0 : i32
    return %c0_i32, %c0_i32_0 : i32, i32
  }
  func.func @transform_2(%arg0: i32) -> (i32, i32) {
    %c0_i32 = arith.constant 0 : i32
    %c0_i32_0 = arith.constant 0 : i32
    %c0_i32_1 = arith.constant 0 : i32
    return %c0_i32, %c0_i32_0 : i32, i32
  }
  func.func @transform_3(%arg0: i32) -> (i32, i32) {
    %c0_i32 = arith.constant 0 : i32
    %c0_i32_0 = arith.constant 0 : i32
    return %c0_i32, %arg0 : i32, i32
  }
}

</mosaic_0001>

<llo_original>
// kernel: tpu_custom_call.1
$region0: #{tpu_custom_call.1}
  #allocation0 [shape = 'u32[]', space=smem, size = 0x4, offset = 0x4, fixed_abs, tag = 'smem constant byte address 0x4 - core index']
  #allocation1 [shape = 'u32[72,128]{1,0:T(1,128)}', space=vmem, size = 0x9000, scoped, tag = 'internal scratch']
  %s0 = inlined_call_operand.vmem [shape: f32[20,2], index: 0, kind: input, shape index: {}]
  %s1 = inlined_call_operand.vmem [shape: f32[10,20], index: 1, kind: input, shape index: {}]
  %s2 = inlined_call_operand.vmem [shape: f32[10,1], index: 2, kind: input, shape index: {}]
  %s3 = inlined_call_operand.vmem [shape: f32[10,2], index: 3, kind: output, shape index: {}]
  %s4 = sld [smem:[#allocation0]]
  $region22: #{tpu_custom_call.1} parent=0
    _
  %s6 = ssub.s32 1, %s4
  %s7 = scalar_select 0, %s6, %s4
  // Predicated region
  $region2: #{tpu_custom_call.1} parent=0 // pred_check
    _
  $region3: #{tpu_custom_call.1} parent=0 // pred_check_branch
    %9 = sbr.rel (0) target = $region5
  $region4: #{tpu_custom_call.1} parent=0 // pred_region
    _
  $region5: #{tpu_custom_call.1} parent=0 // pred_fallthru
    _
  // Predicated region
  $region6: #{tpu_custom_call.1} parent=0 // pred_check
    _
  $region7: #{tpu_custom_call.1} parent=0 // pred_check_branch
    %11 = sbr.rel (0) target = $region9
  $region8: #{tpu_custom_call.1} parent=0 // pred_region
    _
  $region9: #{tpu_custom_call.1} parent=0 // pred_fallthru
    _
  // Predicated region
  $region10: #{tpu_custom_call.1} parent=0 // pred_check
    _
  $region11: #{tpu_custom_call.1} parent=0 // pred_check_branch
    %13 = sbr.rel (0) target = $region13
  $region12: #{tpu_custom_call.1} parent=0 // pred_region
    _
  $region13: #{tpu_custom_call.1} parent=0 // pred_fallthru
    _
  %v14 = vld [vmem:[%s1] sm:$0xff]
  %v15 = vld [vmem:[%s1 + $0x8] sm:$0x3]
  %v16 = vld [vmem:[%s0] sm:$0xff]
  %v17 = vld [vmem:[%s0 + $0x8] sm:$0xff]
  %v18 = vld [vmem:[%s0 + $0x10] sm:$0xf]
  %v19 = vld [vmem:[%s2] sm:$0xff]
  %v20 = vld [vmem:[%s2 + $0x8] sm:$0x3]
  %22 = vset.pattern.permute.xlu0 0
  %23 = vperm.xlu0 %22, %v19
  %v24 = vpop.permute.xlu0 %23
  %27 = vset.pattern.permute.xlu0 0
  %28 = vperm.xlu0 %27, %v20
  %v29 = vpop.permute.xlu0 %28
  %vm31 = vcmask 162816
  %v33 = vsel %vm31, %v14, 0
  %v36 = vsel %vm31, %v15, 0
  %vm38 = vcmask 1043456
  %v40 = vsel %vm38, %v18, 0
  %42 = vmatpush.msra.mxu0 0.0
  %43 = vmatpush.msra.mxu0 0.0
  %44 = vmatpush.msra.mxu0 0.0
  %45 = vmatpush.msra.mxu0 0.0
  %46 = vmatpush.msra.mxu0 0.0
  %47 = vmatpush.msra.mxu0 0.0
  %48 = vmatpush.msra.mxu0 0.0
  %49 = vmatpush.msra.mxu0 0.0
  %50 = vmatpush.msra.mxu0 0.0
  %51 = vmatpush.msra.mxu0 0.0
  %52 = vmatpush.msra.mxu0 0.0
  %53 = vmatpush.msra.mxu0 0.0
  %54 = vmatpush.msra.mxu0 0.0
  %55 = vmatpush.msra.mxu0 %v40
  %56 = vmatpush.msra.mxu0 %v17
  %57 = vmatpush.msra.mxu0 %v16
  %58 = vmatmul.f32.gmra.mxu0 %v33
  %v59 = vpop.f32.mrf.mxu0
  %v60 = vadd.f32 %v24, %v59
  %61 = vmatmul.f32.gmra.mxu0 %v36
  %v62 = vpop.f32.mrf.mxu0
  %v63 = vadd.f32 %v29, %v62
  %64 = vdwg.mxu0
  %v65 = vmul.f32 %v60, %v60
  %v66 = vmul.f32 %v63, %v63
  %vm67 = vcmask 15360
  %68 = vst.msk [vmem:[%s3] sm:$0xff] %vm67, %v65
  %vm69 = vcmask 9216
  %70 = vst.msk [vmem:[%s3 + $0x8] sm:$0x3] %vm69, %v66
  // Predicated region
  $region14: #{tpu_custom_call.1} parent=0 // pred_check
    _
  $region15: #{tpu_custom_call.1} parent=0 // pred_check_branch
    %72 = sbr.rel (0) target = $region17
  $region16: #{tpu_custom_call.1} parent=0 // pred_region
    _
  $region17: #{tpu_custom_call.1} parent=0 // pred_fallthru
    _
  // Predicated region
  $region18: #{tpu_custom_call.1} parent=0 // pred_check
    _
  $region19: #{tpu_custom_call.1} parent=0 // pred_check_branch
    %74 = sbr.rel (0) target = $region21
  $region20: #{tpu_custom_call.1} parent=0 // pred_region
    _
  $region21: #{tpu_custom_call.1} parent=0 // pred_fallthru
    _

</llo_original>
